<compile_context>
chip_gen: v7x
topology: tpu7x:2x2x1
jax: 0.10.0
libtpu: 0.0.40
codegen_flags: <defaults>
</compile_context>

<pallas_src>
import functools

import jax
import jax.numpy as jnp
from jax.experimental import pallas as pl
from jax.experimental.pallas import tpu as pltpu

_LANE = 128
_TARGET_BLOCK_BYTES = 4 * 1024 * 1024     # per block buffer (4x resident with dbl-buffered in+out = 16 MiB)
_VMEM_LIMIT_BYTES = 40 * 1024 * 1024      # explicit scoped-VMEM budget; fits v7x's 64 MiB and v5e/v6e's 128 MiB
_TARGET_GRID_BLOCKS = 8                   # aim for >= 8 grid steps so v7x megacore shards the parallel axis


def _fsq_kernel(x_ref, o_ref, *, granularity):
    x = x_ref[...]
    # Keep compute in f32: bf16 tanh can flip values sitting on bin boundaries.
    z = jnp.tanh(x.astype(jnp.float32)) * granularity
    # Forward value is round(z) (round-half-to-even, same as torch.round);
    # the straight-through gradient is handled by custom_vjp outside.
    o_ref[...] = jnp.round(z).astype(o_ref.dtype)


def _min_sublane(dtype):
    itemsize = jnp.dtype(dtype).itemsize
    if itemsize >= 4:
        return 8
    if itemsize == 2:
        return 16
    return 32


def _pick_width(n):
    """Largest lane-multiple width (<= 4096) dividing n exactly -> no pad copy."""
    for w in range(4096, _LANE - 1, -_LANE):
        if n % w == 0:
            return w, False
    if n < _LANE:
        return n, False            # tiny tensor: single (rows=1, n) full-extent block
    return _LANE, True             # rare fallback: n not a multiple of 128


def _fsq_forward_impl(x, granularity):
    orig_shape = x.shape
    orig_dtype = x.dtype
    n = x.size
    if n == 0:
        return x

    itemsize = jnp.dtype(orig_dtype).itemsize
    min_sub = _min_sublane(orig_dtype)

    width, needs_pad = _pick_width(n)
    rows = pl.cdiv(n, width)
    padded = rows * width

    # For contiguous inputs these reshapes lower to bitcasts (no HBM traffic).
    flat = x.reshape(-1)
    if needs_pad:
        # Rare path (n % 128 != 0): pad+slice costs one extra copy of the array.
        flat = jnp.pad(flat, (0, padded - n))
    x2d = flat.reshape(rows, width)

    # Row tile: ~4 MiB per block buffer, multiple of the dtype's minimum
    # sublane count, and capped so the grid has >= _TARGET_GRID_BLOCKS steps
    # (when rows permit) for megacore sharding + DMA/compute overlap.
    if rows < min_sub:
        row_tile = rows  # full-extent block along rows: always legal
    else:
        bytes_tile = max(min_sub,
                         (_TARGET_BLOCK_BYTES // (width * itemsize)) // min_sub * min_sub)
        row_tile = min(bytes_tile, (rows // min_sub) * min_sub)
        if rows >= 2 * min_sub:
            per_block = pl.cdiv(rows, _TARGET_GRID_BLOCKS)
            per_block = pl.cdiv(per_block, min_sub) * min_sub
            row_tile = min(row_tile, max(min_sub, per_block))
    grid = (pl.cdiv(rows, row_tile),)

    kernel = functools.partial(_fsq_kernel, granularity=float(granularity))

    out2d = pl.pallas_call(
        kernel,
        out_shape=jax.ShapeDtypeStruct((rows, width), orig_dtype),
        grid_spec=pltpu.PrefetchScalarGridSpec(
            num_scalar_prefetch=0,
            grid=grid,
            in_specs=[pl.BlockSpec((row_tile, width), lambda i: (i, 0))],
            out_specs=pl.BlockSpec((row_tile, width), lambda i: (i, 0)),
        ),
        compiler_params=pltpu.CompilerParams(
            dimension_semantics=("parallel",),
            vmem_limit_bytes=_VMEM_LIMIT_BYTES,
        ),
        cost_estimate=pl.CostEstimate(
            flops=2 * n,
            transcendentals=n,
            bytes_accessed=2 * n * itemsize,
        ),
    )(x2d)

    out = out2d.reshape(-1)
    if padded != n:
        out = out[:n]
    return out.reshape(orig_shape)


@functools.partial(jax.custom_vjp, nondiff_argnums=(1,))
def finite_scalar_quantization(x, num_bins):
    """FiniteScalarQuantization.forward: round(tanh(x) * (num_bins - 1)) with STE grad."""
    return _fsq_forward_impl(x, num_bins - 1)


def _fsq_fwd(x, num_bins):
    return _fsq_forward_impl(x, num_bins - 1), x


def _fsq_bwd(num_bins, x, g):
    # Straight-through estimator: d(zhat)/dx == d(z)/dx = granularity * (1 - tanh(x)^2)
    granularity = float(num_bins - 1)
    t = jnp.tanh(x.astype(jnp.float32))
    dx = g.astype(jnp.float32) * granularity * (1.0 - t * t)
    return (dx.astype(x.dtype),)


finite_scalar_quantization.defvjp(_fsq_fwd, _fsq_bwd)


if __name__ == "__main__":
    key = jax.random.PRNGKey(0)
    # Small NCHW input consistent with an autoencoder latent: (B=2, C=4, H=16, W=16)
    x = jax.random.normal(key, (2, 4, 16, 16), dtype=jnp.float32) * 2.0
    num_bins = 8  # quantization_granularity = 7

    y = finite_scalar_quantization(x, num_bins)
    jax.block_until_ready(y)

    # Forward reference check (same math as the PyTorch module).
    z_ref = jnp.tanh(x) * (num_bins - 1)
    y_ref = jnp.round(z_ref)
    assert y.shape == x.shape and y.dtype == x.dtype
    assert jnp.allclose(y, y_ref, atol=1e-5), "forward mismatch vs reference"

    # Gradient check: STE gradient == granularity * (1 - tanh(x)^2).
    gx = jax.grad(lambda v: finite_scalar_quantization(v, num_bins).sum())(x)
    gx_ref = (num_bins - 1) * (1.0 - jnp.tanh(x) ** 2)
    assert jnp.allclose(gx, gx_ref, atol=1e-5), "gradient mismatch vs STE reference"

    print("KERNEL_OK")
</pallas_src>

<mosaic_0001>
module attributes {stable_mosaic.version = 11 : i64} {
  func.func @_fsq_kernel(%arg0: i32, %arg1: memref<1x2048xf32, #tpu.memory_space<vmem>>, %arg2: memref<1x2048xf32, #tpu.memory_space<vmem>>) attributes {dimension_semantics = [#tpu.dimension_semantics<parallel>], iteration_bounds = array<i64: 1>, scalar_prefetch = 0 : i64, scratch_operands = 0 : i64, tpu.core_type = #tpu.core_type<tc>, window_params = [{transform_indices = @transform_0, window_bounds = array<i64: 1, 2048>}, {transform_indices = @transform_1, window_bounds = array<i64: 1, 2048>}]} {
    %c0 = arith.constant 0 : index
    %c0_0 = arith.constant 0 : index
    %0 = vector.load %arg1[%c0, %c0_0] : memref<1x2048xf32, #tpu.memory_space<vmem>>, vector<1x2048xf32>
    %1 = math.tanh %0 : vector<1x2048xf32>
    %cst = arith.constant 7.000000e+00 : f32
    %2 = vector.broadcast %cst : f32 to vector<1x2048xf32>
    %3 = arith.mulf %1, %2 : vector<1x2048xf32>
    %4 = math.roundeven %3 : vector<1x2048xf32>
    %c0_1 = arith.constant 0 : index
    %c0_2 = arith.constant 0 : index
    %5 = vector.load %arg2[%c0_1, %c0_2] : memref<1x2048xf32, #tpu.memory_space<vmem>>, vector<1x2048xf32>
    tpu.vector_store %arg2[%c0_1, %c0_2], %4 {strides = array<i32>} : memref<1x2048xf32, #tpu.memory_space<vmem>>, vector<1x2048xf32>,
    return
  }
  func.func @transform_0(%arg0: i32) -> (i32, i32) {
    %c0_i32 = arith.constant 0 : i32
    %c0_i32_0 = arith.constant 0 : i32
    return %arg0, %c0_i32 : i32, i32
  }
  func.func @transform_1(%arg0: i32) -> (i32, i32) {
    %c0_i32 = arith.constant 0 : i32
    %c0_i32_0 = arith.constant 0 : i32
    return %arg0, %c0_i32 : i32, i32
  }
}

</mosaic_0001>

<llo_original>
// kernel: tpu_custom_call.1
$region0: #{tpu_custom_call.1}
  #allocation0 [shape = 'u32[]', space=smem, size = 0x4, offset = 0x4, fixed_abs, tag = 'smem constant byte address 0x4 - core index']
  #allocation1 [shape = 'u32[144,128]{1,0:T(1,128)}', space=vmem, size = 0x12000, scoped, tag = 'internal scratch']
  %s0 = inlined_call_operand.hbm [shape: f32[1,2048], index: 0, kind: input, shape index: {}]
  %s1 = inlined_call_operand.hbm [shape: f32[1,2048], index: 1, kind: output, shape index: {}]
  %s2 = sld [smem:[#allocation0]]
  $region18: #{tpu_custom_call.1} parent=0
    _
  %s4 = ssub.s32 1, %s2
  %s5 = scalar_select 0, %s4, %s2
  $region1: #{tpu_custom_call.1} parent=0
    #allocation2 [shape = 'u8[8192]{0}', space=vmem, size = 0x2000, scoped, tag = 'input window, operand 0, single buffered']
    #allocation3 [shape = 's32[1]{0}', space=sflag, size = 0x4, scoped, tag = 'scoped memory for tpu_custom_call.1']
    #allocation4 [shape = 's32[1]{0}', space=sflag, size = 0x4, scoped, tag = 'scoped memory for tpu_custom_call.1']
    #allocation5 [shape = 'u8[8192]{0}', space=vmem, size = 0x2000, scoped, tag = 'output window, operand 0, single buffered']
    %6 = vsyncpa [#allocation3], 0
    %7 = vsyncpa [#allocation4], 0
    // Predicated region
    $region2: #{tpu_custom_call.1} parent=1 // pred_check
      _
    $region3: #{tpu_custom_call.1} parent=1 // pred_check_branch
      %9 = sbr.rel (0) target = $region5
    $region4: #{tpu_custom_call.1} parent=1 // pred_region
      %s11 = ssub.s32 256, 256
      %12 = vsyncadd [#allocation3], %s11
      %s14 = sshll.u32 [#allocation2], 4
      %s15 = int_to_ptr.vmem [resolvable:$true] %s14
      %17 = dma.hbm_to_vmem [thread:$0]  %s0, 256, %s15, [#allocation3]
    $region5: #{tpu_custom_call.1} parent=1 // pred_fallthru
      _
    // Predicated region
    $region6: #{tpu_custom_call.1} parent=1 // pred_check
      _
    $region7: #{tpu_custom_call.1} parent=1 // pred_check_branch
      %19 = sbr.rel (0) target = $region9
    $region8: #{tpu_custom_call.1} parent=1 // pred_region
      %20 = dma.done [#allocation3], 256
    $region9: #{tpu_custom_call.1} parent=1 // pred_fallthru
      _
    %v21 = vld [vmem:[#allocation2] sm:$0xff]
    %v22 = vld [vmem:[#allocation2 + $0x8] sm:$0xff]
    %v23 = vtanh.pop %v21
    %v24 = vtanh.pop %v22
    %v25 = vmul.f32 %v23, 7.0
    %v26 = vmul.f32 %v24, 7.0
    %v27 = vround.ne.pseudo %v25
    %v28 = vround.ne.pseudo %v26
    %29 = vst [vmem:[#allocation5] sm:$0xff] %v27
    %30 = vst [vmem:[#allocation5 + $0x8] sm:$0xff] %v28
    // Predicated region
    $region10: #{tpu_custom_call.1} parent=1 // pred_check
      _
    $region11: #{tpu_custom_call.1} parent=1 // pred_check_branch
      %32 = sbr.rel (0) target = $region13
    $region12: #{tpu_custom_call.1} parent=1 // pred_region
      %s34 = ssub.s32 256, 256
      %35 = vsyncadd [#allocation4], %s34
      %s37 = sshll.u32 [#allocation5], 4
      %s38 = int_to_ptr.vmem [resolvable:$true] %s37
      %40 = dma.vmem_to_hbm [thread:$0]  %s38, 256, %s1, [#allocation4]
    $region13: #{tpu_custom_call.1} parent=1 // pred_fallthru
      _
    // Predicated region
    $region14: #{tpu_custom_call.1} parent=1 // pred_check
      _
    $region15: #{tpu_custom_call.1} parent=1 // pred_check_branch
      %42 = sbr.rel (0) target = $region17
    $region16: #{tpu_custom_call.1} parent=1 // pred_region
      %43 = dma.done [#allocation4], 256
    $region17: #{tpu_custom_call.1} parent=1 // pred_fallthru
      _
    %44 = vsyncpa [#allocation3], 1
    %45 = vsyncpa [#allocation4], 1

</llo_original>
